<compile_context>
chip_gen: v7x
topology: tpu7x:2x2x1
jax: 0.10.0
libtpu: 0.0.40
codegen_flags: <defaults>
</compile_context>

<pallas_src>
import functools

import jax
import jax.numpy as jnp
from jax.experimental import pallas as pl
from jax.experimental.pallas import tpu as pltpu


def _round_up(x: int, m: int) -> int:
    return ((x + m - 1) // m) * m


# ---------------------------------------------------------------------------
# Hardware-dependent configuration (queried once, outside the jit).
# ---------------------------------------------------------------------------

def _device_kind() -> str:
    try:
        return jax.devices()[0].device_kind.lower()
    except Exception:
        return ""


def _vmem_cap_bytes(kind: str) -> int:
    # v7x: 64 MiB per TensorCore (resident weights duplicated across both TCs
    # when the grid axis is "parallel") -> leave headroom.
    # v5e / v6e: 128 MiB physical; ~100 MiB scoped is safe.
    if "v7" in kind:
        return 56 << 20
    return 100 << 20


def _lane_multiple(kind: str) -> int:
    # v6e / v7x have 2x256x256 MXUs -> 256-aligned contraction/output dims fill
    # them; v5e's 4x128x128 MXU is saturated at 128.
    return 128 if ("v5" in kind or not kind) else 256


def _feature_pad(dim: int, lane_mult: int) -> int:
    if dim <= 128 or lane_mult == 128:
        return _round_up(dim, 128)
    return _round_up(dim, lane_mult)


def _buffered_supported() -> bool:
    if not hasattr(pl, "Buffered"):
        return False
    try:
        pl.BlockSpec((8, 128), lambda i: (0, 0), pipeline_mode=pl.Buffered(1))
        return True
    except TypeError:
        return False


_SINGLE_BUFFER_WEIGHTS = _buffered_supported()


def _resident_spec(shape):
    # Constant index_map -> fetched once and held resident across the grid.
    # Buffered(1) halves the resident VMEM footprint (no useless double buffer).
    index_map = lambda i: (0,) * len(shape)
    if _SINGLE_BUFFER_WEIGHTS:
        return pl.BlockSpec(shape, index_map, pipeline_mode=pl.Buffered(1))
    return pl.BlockSpec(shape, index_map)


# ---------------------------------------------------------------------------
# VMEM budgeting / tile selection.
# ---------------------------------------------------------------------------

def _vmem_bytes_est(tn: int, e_pad: int, h_pad: int, x_itemsize: int) -> int:
    wmult = 1 if _SINGLE_BUFFER_WEIGHTS else 2
    weights = wmult * ((e_pad * h_pad + h_pad * e_pad) * 2 + (h_pad + e_pad) * 4)
    stream = 2 * tn * e_pad * x_itemsize + 2 * tn * e_pad * 4   # x / out, double-buffered
    interm = tn * h_pad * (4 + 2) + tn * e_pad * 2              # f32 h + bf16 copies
    return weights + stream + interm


def _choose_tiling(n: int, e_pad: int, h_pad: int, x_itemsize: int, cap: int):
    n8 = _round_up(n, 8)

    def fits(tn_):
        return 1.4 * _vmem_bytes_est(tn_, e_pad, h_pad, x_itemsize) <= cap

    tn = _round_up(min(4096, n8), 8)
    while tn > 8 and not fits(tn):
        tn = _round_up(max(8, tn // 2), 8)
    # TODO(synk): if even tn == 8 does not fit (very large embed dims on v7x),
    # fall back to a hidden-dim-tiled grid (extra "arbitrary" axis over H with an
    # f32 accumulator scratch) instead of keeping everything resident.

    num_tiles = -(-n8 // tn)
    if num_tiles == 1 and n8 >= 2048:
        num_tiles = 2                       # give both v7x TensorCores work
    tn = _round_up(-(-n8 // num_tiles), 8)  # rebalance -> minimal row padding
    n_pad = tn * num_tiles
    return tn, n_pad


# ---------------------------------------------------------------------------
# Kernel.
# ---------------------------------------------------------------------------

def _ffn_kernel(mm_dtype, x_ref, w1_ref, b1_ref, w2_ref, b2_ref, o_ref):
    # First linear: [TN, E_pad] @ [E_pad, H_pad] -> f32 accumulation on the MXU.
    x = x_ref[...].astype(mm_dtype)          # VPU cast, hidden under the MXU
    h = jnp.dot(x, w1_ref[...], preferred_element_type=jnp.float32)
    h = h + b1_ref[...]                      # bias add in f32
    h = jnp.maximum(h, 0.01 * h)             # LeakyReLU (slope 0.01), single VALU max
    # Second linear: [TN, H_pad] @ [H_pad, E_pad] -> f32 accumulation.
    out = jnp.dot(h.astype(mm_dtype), w2_ref[...],
                  preferred_element_type=jnp.float32)
    out = out + b2_ref[...]
    o_ref[...] = out.astype(o_ref.dtype)


@functools.partial(
    jax.jit,
    static_argnames=("e", "e_pad", "h_pad", "tn", "n", "n_pad",
                     "mm_dtype_name", "vmem_limit"))
def _ffn_run(x, w1p, b1p, w2p, b2p, *, e, e_pad, h_pad, tn, n, n_pad,
             mm_dtype_name, vmem_limit):
    mm_dtype = jnp.dtype(mm_dtype_name)
    out_dtype = x.dtype
    needs_pad = (n_pad != n) or (e_pad != e)
    if needs_pad:
        # Only when N/E are not tile-aligned; pad + cast in one pass (bf16 halves
        # the extra HBM traffic of that pass).
        x = jnp.pad(x, ((0, n_pad - n), (0, e_pad - e))).astype(mm_dtype)

    grid = (n_pad // tn,)
    cost = pl.CostEstimate(
        flops=4 * n_pad * e_pad * h_pad,
        transcendentals=0,
        bytes_accessed=(n_pad * e_pad * x.dtype.itemsize       # x
                        + 2 * e_pad * h_pad * w1p.dtype.itemsize  # w1 + w2
                        + (h_pad + e_pad) * 4                     # biases
                        + n_pad * e_pad * out_dtype.itemsize))    # out

    out_padded = pl.pallas_call(
        functools.partial(_ffn_kernel, mm_dtype),
        out_shape=jax.ShapeDtypeStruct((n_pad, e_pad), out_dtype),
        grid=grid,
        in_specs=[
            pl.BlockSpec((tn, e_pad), lambda i: (i, 0)),   # x tile (streams)
            _resident_spec((e_pad, h_pad)),                # w1 (resident, 1-buffered)
            _resident_spec((1, h_pad)),                    # b1
            _resident_spec((h_pad, e_pad)),                # w2
            _resident_spec((1, e_pad)),                    # b2
        ],
        out_specs=pl.BlockSpec((tn, e_pad), lambda i: (i, 0)),
        compiler_params=pltpu.CompilerParams(
            dimension_semantics=("parallel",),
            vmem_limit_bytes=vmem_limit),
        cost_estimate=cost,
    )(x, w1p, b1p, w2p, b2p)

    if needs_pad:
        return out_padded[:n, :e]
    return out_padded


# ---------------------------------------------------------------------------
# Public API.
# ---------------------------------------------------------------------------

def prepare_ffn_params(w1, b1, w2, b2, *, matmul_dtype=jnp.bfloat16):
    """One-time weight preparation (pad to lane-dense multiples + cast).

    w1: [E, 2E] (transposed vs torch's [2E, E]), b1: [2E], w2: [2E, E], b2: [E].
    `matmul_dtype` is the explicit precision knob for the MXU operands
    (bf16 by default; accumulation stays f32).
    """
    e, h = w1.shape
    assert w2.shape == (h, e) and b1.shape == (h,) and b2.shape == (e,)
    kind = _device_kind()
    lane = _lane_multiple(kind)
    e_pad = _feature_pad(e, lane)
    h_pad = _feature_pad(h, lane)
    mm = jnp.dtype(matmul_dtype)
    # Zero padding is numerically exact: padded hidden columns multiply into
    # zero rows of W2; padded output columns/rows are sliced off.
    w1p = jnp.pad(w1, ((0, e_pad - e), (0, h_pad - h))).astype(mm)
    w2p = jnp.pad(w2, ((0, h_pad - h), (0, e_pad - e))).astype(mm)
    b1p = jnp.pad(b1, (0, h_pad - h)).astype(jnp.float32).reshape(1, h_pad)
    b2p = jnp.pad(b2, (0, e_pad - e)).astype(jnp.float32).reshape(1, e_pad)
    return {
        "w1": w1p, "b1": b1p, "w2": w2p, "b2": b2p,
        "e": e, "h": h, "e_pad": e_pad, "h_pad": h_pad,
        "mm_dtype_name": mm.name,
        "vmem_cap": _vmem_cap_bytes(kind),
    }


def feed_forward_layer(x, params):
    """Fused FFN forward: x [N, E] -> [N, E] (x.dtype)."""
    n, e = x.shape
    assert e == params["e"]
    e_pad, h_pad = params["e_pad"], params["h_pad"]
    cap = params["vmem_cap"]
    tn, n_pad = _choose_tiling(n, e_pad, h_pad, x.dtype.itemsize, cap)
    est = _vmem_bytes_est(tn, e_pad, h_pad, x.dtype.itemsize)
    vmem_limit = int(min(cap, max(int(1.4 * est) + (2 << 20), 16 << 20)))
    return _ffn_run(x, params["w1"], params["b1"], params["w2"], params["b2"],
                    e=e, e_pad=e_pad, h_pad=h_pad, tn=tn, n=n, n_pad=n_pad,
                    mm_dtype_name=params["mm_dtype_name"], vmem_limit=vmem_limit)


def _reference(x, w1, b1, w2, b2):
    h = x @ w1 + b1
    h = jnp.where(h > 0, h, 0.01 * h)
    return h @ w2 + b2


if __name__ == "__main__":
    # Small shapes consistent with the module: N tokens, embed_dim E, hidden 2E.
    N, E = 8, 32
    H = 2 * E

    key = jax.random.PRNGKey(0)
    kx, kw1, kb1, kw2, kb2 = jax.random.split(key, 5)

    x = jax.random.normal(kx, (N, E), dtype=jnp.float32)

    # Deterministic init mimicking torch.nn.Linear: U(-1/sqrt(fan_in), +1/sqrt(fan_in))
    lim1 = 1.0 / (E ** 0.5)
    w1 = jax.random.uniform(kw1, (E, H), minval=-lim1, maxval=lim1, dtype=jnp.float32)
    b1 = jax.random.uniform(kb1, (H,), minval=-lim1, maxval=lim1, dtype=jnp.float32)

    lim2 = 1.0 / (H ** 0.5)
    w2 = jax.random.uniform(kw2, (H, E), minval=-lim2, maxval=lim2, dtype=jnp.float32)
    b2 = jax.random.uniform(kb2, (E,), minval=-lim2, maxval=lim2, dtype=jnp.float32)

    params = prepare_ffn_params(w1, b1, w2, b2)      # one-time pad/cast (not per-call)
    out = jax.block_until_ready(feed_forward_layer(x, params))

    ref = _reference(x, w1, b1, w2, b2)
    assert out.shape == (N, E)
    # bf16 matmul operands (f32 accumulation) => relaxed tolerance vs f32 ref.
    assert jnp.allclose(out, ref, atol=3e-2, rtol=3e-2), (
        float(jnp.max(jnp.abs(out - ref))))

    print("KERNEL_OK")
</pallas_src>

<mosaic_0001>
module attributes {stable_mosaic.version = 11 : i64} {
  func.func @_ffn_kernel(%arg0: i32, %arg1: memref<8x128xbf16, #tpu.memory_space<vmem>>, %arg2: memref<128x128xbf16, #tpu.memory_space<vmem>>, %arg3: memref<1x128xf32, #tpu.memory_space<vmem>>, %arg4: memref<128x128xbf16, #tpu.memory_space<vmem>>, %arg5: memref<1x128xf32, #tpu.memory_space<vmem>>, %arg6: memref<8x128xf32, #tpu.memory_space<vmem>>) attributes {dimension_semantics = [#tpu.dimension_semantics<parallel>], iteration_bounds = array<i64: 1>, scalar_prefetch = 0 : i64, scratch_operands = 0 : i64, tpu.core_type = #tpu.core_type<tc>, window_params = [{transform_indices = @transform_0, window_bounds = array<i64: 8, 128>}, {pipeline_mode = #tpu.pipeline_mode<synchronous>, transform_indices = @transform_1, window_bounds = array<i64: 128, 128>}, {pipeline_mode = #tpu.pipeline_mode<synchronous>, transform_indices = @transform_2, window_bounds = array<i64: 1, 128>}, {pipeline_mode = #tpu.pipeline_mode<synchronous>, transform_indices = @transform_3, window_bounds = array<i64: 128, 128>}, {pipeline_mode = #tpu.pipeline_mode<synchronous>, transform_indices = @transform_4, window_bounds = array<i64: 1, 128>}, {transform_indices = @transform_5, window_bounds = array<i64: 8, 128>}]} {
    %c0 = arith.constant 0 : index
    %c0_0 = arith.constant 0 : index
    %0 = vector.load %arg1[%c0, %c0_0] : memref<8x128xbf16, #tpu.memory_space<vmem>>, vector<8x128xbf16>
    %c0_1 = arith.constant 0 : index
    %c0_2 = arith.constant 0 : index
    %1 = vector.load %arg2[%c0_1, %c0_2] : memref<128x128xbf16, #tpu.memory_space<vmem>>, vector<128x128xbf16>
    %cst = arith.constant dense<0.000000e+00> : vector<8x128xf32>
    %2 = tpu.matmul %0, %1, %cst {dimension_numbers = #tpu.dot_dimension_numbers<[1], [0], [0], [1], [0, 0, 1, 1], [], []>} : vector<8x128xbf16>, vector<128x128xbf16>, vector<8x128xf32> -> vector<8x128xf32>
    %c0_3 = arith.constant 0 : index
    %c0_4 = arith.constant 0 : index
    %3 = vector.load %arg3[%c0_3, %c0_4] : memref<1x128xf32, #tpu.memory_space<vmem>>, vector<1x128xf32>
    %4 = vector.broadcast %3 : vector<1x128xf32> to vector<8x128xf32>
    %5 = arith.addf %2, %4 : vector<8x128xf32>
    %cst_5 = arith.constant 0.00999999977 : f32
    %6 = vector.broadcast %cst_5 : f32 to vector<8x128xf32>
    %7 = arith.mulf %6, %5 : vector<8x128xf32>
    %8 = arith.maximumf %5, %7 : vector<8x128xf32>
    %9 = arith.truncf %8 : vector<8x128xf32> to vector<8x128xbf16>
    %c0_6 = arith.constant 0 : index
    %c0_7 = arith.constant 0 : index
    %10 = vector.load %arg4[%c0_6, %c0_7] : memref<128x128xbf16, #tpu.memory_space<vmem>>, vector<128x128xbf16>
    %cst_8 = arith.constant dense<0.000000e+00> : vector<8x128xf32>
    %11 = tpu.matmul %9, %10, %cst_8 {dimension_numbers = #tpu.dot_dimension_numbers<[1], [0], [0], [1], [0, 0, 1, 1], [], []>} : vector<8x128xbf16>, vector<128x128xbf16>, vector<8x128xf32> -> vector<8x128xf32>
    %c0_9 = arith.constant 0 : index
    %c0_10 = arith.constant 0 : index
    %12 = vector.load %arg5[%c0_9, %c0_10] : memref<1x128xf32, #tpu.memory_space<vmem>>, vector<1x128xf32>
    %13 = vector.broadcast %12 : vector<1x128xf32> to vector<8x128xf32>
    %14 = arith.addf %11, %13 : vector<8x128xf32>
    %c0_11 = arith.constant 0 : index
    %c0_12 = arith.constant 0 : index
    %15 = vector.load %arg6[%c0_11, %c0_12] : memref<8x128xf32, #tpu.memory_space<vmem>>, vector<8x128xf32>
    tpu.vector_store %arg6[%c0_11, %c0_12], %14 {strides = array<i32>} : memref<8x128xf32, #tpu.memory_space<vmem>>, vector<8x128xf32>,
    return
  }
  func.func @transform_0(%arg0: i32) -> (i32, i32) {
    %c0_i32 = arith.constant 0 : i32
    %c0_i32_0 = arith.constant 0 : i32
    return %arg0, %c0_i32 : i32, i32
  }
  func.func @transform_1(%arg0: i32) -> (i32, i32) {
    %c0_i32 = arith.constant 0 : i32
    %c0_i32_0 = arith.constant 0 : i32
    %c0_i32_1 = arith.constant 0 : i32
    return %c0_i32, %c0_i32_0 : i32, i32
  }
  func.func @transform_2(%arg0: i32) -> (i32, i32) {
    %c0_i32 = arith.constant 0 : i32
    %c0_i32_0 = arith.constant 0 : i32
    %c0_i32_1 = arith.constant 0 : i32
    return %c0_i32, %c0_i32_0 : i32, i32
  }
  func.func @transform_3(%arg0: i32) -> (i32, i32) {
    %c0_i32 = arith.constant 0 : i32
    %c0_i32_0 = arith.constant 0 : i32
    %c0_i32_1 = arith.constant 0 : i32
    return %c0_i32, %c0_i32_0 : i32, i32
  }
  func.func @transform_4(%arg0: i32) -> (i32, i32) {
    %c0_i32 = arith.constant 0 : i32
    %c0_i32_0 = arith.constant 0 : i32
    %c0_i32_1 = arith.constant 0 : i32
    return %c0_i32, %c0_i32_0 : i32, i32
  }
  func.func @transform_5(%arg0: i32) -> (i32, i32) {
    %c0_i32 = arith.constant 0 : i32
    %c0_i32_0 = arith.constant 0 : i32
    return %arg0, %c0_i32 : i32, i32
  }
}

</mosaic_0001>

<llo_original>
// kernel: _ffn_run.1
$region0: #{_ffn_run.1}
  #allocation0 [shape = 'u32[]', space=smem, size = 0x4, offset = 0x4, fixed_abs, tag = 'smem constant byte address 0x4 - core index']
  #allocation1 [shape = 'u32[144,128]{1,0:T(1,128)}', space=vmem, size = 0x12000, scoped, tag = 'internal scratch']
  %s0 = inlined_call_operand.vmem [shape: bf16[8,128], index: 0, kind: input, shape index: {}]
  %s1 = inlined_call_operand.hbm [shape: bf16[128,128], index: 1, kind: input, shape index: {}]
  %s2 = inlined_call_operand.vmem [shape: f32[1,128], index: 2, kind: input, shape index: {}]
  %s3 = inlined_call_operand.hbm [shape: bf16[128,128], index: 3, kind: input, shape index: {}]
  %s4 = inlined_call_operand.vmem [shape: f32[1,128], index: 4, kind: input, shape index: {}]
  %s5 = inlined_call_operand.hbm [shape: f32[8,128], index: 5, kind: output, shape index: {}]
  %s6 = sld [smem:[#allocation0]]
  $region38: #{_ffn_run.1} parent=0
    _
  %s8 = ssub.s32 1, %s6
  %s9 = scalar_select 0, %s8, %s6
  $region1: #{_ffn_run.1} parent=0
    #allocation2 [shape = 'u8[32768]{0}', space=vmem, size = 0x8000, scoped, tag = 'input window, operand 1, single buffered']
    #allocation3 [shape = 's32[1]{0}', space=sflag, size = 0x4, scoped, tag = 'scoped memory for _ffn_run.1']
    #allocation4 [shape = 's32[1]{0}', space=sflag, size = 0x4, scoped, tag = 'scoped memory for _ffn_run.1']
    #allocation5 [shape = 'u8[32768]{0}', space=vmem, size = 0x8000, scoped, tag = 'input window, operand 3, single buffered']
    #allocation6 [shape = 's32[1]{0}', space=sflag, size = 0x4, scoped, tag = 'scoped memory for _ffn_run.1']
    #allocation7 [shape = 'u8[4096]{0}', space=vmem, size = 0x1000, scoped, tag = 'output window, operand 0, single buffered']
    %10 = vsyncpa [#allocation3], 0
    %11 = vsyncpa [#allocation6], 0
    %12 = vsyncpa [#allocation4], 0
    // Predicated region
    $region2: #{_ffn_run.1} parent=1 // pred_check
      _
    $region3: #{_ffn_run.1} parent=1 // pred_check_branch
      %14 = sbr.rel (0) target = $region5
    $region4: #{_ffn_run.1} parent=1 // pred_region
      _
    $region5: #{_ffn_run.1} parent=1 // pred_fallthru
      _
    // Predicated region
    $region6: #{_ffn_run.1} parent=1 // pred_check
      _
    $region7: #{_ffn_run.1} parent=1 // pred_check_branch
      %16 = sbr.rel (0) target = $region9
    $region8: #{_ffn_run.1} parent=1 // pred_region
      %s18 = ssub.s32 1024, 1024
      %19 = vsyncadd [#allocation3], %s18
      %s20 = sshll.u32 [#allocation2], 4
      %s21 = int_to_ptr.vmem [resolvable:$true] %s20
      %26 = dma.hbm_to_vmem [thread:$0]  %s1, 1024, %s21, [#allocation3], 64, 64, 4
    $region9: #{_ffn_run.1} parent=1 // pred_fallthru
      _
    // Predicated region
    $region10: #{_ffn_run.1} parent=1 // pred_check
      _
    $region11: #{_ffn_run.1} parent=1 // pred_check_branch
      %28 = sbr.rel (0) target = $region13
    $region12: #{_ffn_run.1} parent=1 // pred_region
      _
    $region13: #{_ffn_run.1} parent=1 // pred_fallthru
      _
    // Predicated region
    $region14: #{_ffn_run.1} parent=1 // pred_check
      _
    $region15: #{_ffn_run.1} parent=1 // pred_check_branch
      %30 = sbr.rel (0) target = $region17
    $region16: #{_ffn_run.1} parent=1 // pred_region
      %s32 = ssub.s32 1024, 1024
      %33 = vsyncadd [#allocation6], %s32
      %s34 = sshll.u32 [#allocation5], 4
      %s35 = int_to_ptr.vmem [resolvable:$true] %s34
      %40 = dma.hbm_to_vmem [thread:$0]  %s3, 1024, %s35, [#allocation6], 64, 64, 4
    $region17: #{_ffn_run.1} parent=1 // pred_fallthru
      _
    // Predicated region
    $region18: #{_ffn_run.1} parent=1 // pred_check
      _
    $region19: #{_ffn_run.1} parent=1 // pred_check_branch
      %42 = sbr.rel (0) target = $region21
    $region20: #{_ffn_run.1} parent=1 // pred_region
      _
    $region21: #{_ffn_run.1} parent=1 // pred_fallthru
      _
    // Predicated region
    $region22: #{_ffn_run.1} parent=1 // pred_check
      _
    $region23: #{_ffn_run.1} parent=1 // pred_check_branch
      %44 = sbr.rel (0) target = $region25
    $region24: #{_ffn_run.1} parent=1 // pred_region
      %45 = dma.done [#allocation3], 1024
    $region25: #{_ffn_run.1} parent=1 // pred_fallthru
      _
    // Predicated region
    $region26: #{_ffn_run.1} parent=1 // pred_check
      _
    $region27: #{_ffn_run.1} parent=1 // pred_check_branch
      %47 = sbr.rel (0) target = $region29
    $region28: #{_ffn_run.1} parent=1 // pred_region
      %48 = dma.done [#allocation6], 1024
    $region29: #{_ffn_run.1} parent=1 // pred_fallthru
      _
    %v50 = vld [vmem:[%s0] sm:$0xf]
    %v51 = vld [vmem:[#allocation2] sm:$0xf]
    %v52 = vld [vmem:[#allocation2 + $0x4] sm:$0xf]
    %v53 = vld [vmem:[#allocation2 + $0x8] sm:$0xf]
    %v54 = vld [vmem:[#allocation2 + $0xc] sm:$0xf]
    %v55 = vld [vmem:[#allocation2 + $0x10] sm:$0xf]
    %v56 = vld [vmem:[#allocation2 + $0x14] sm:$0xf]
    %v57 = vld [vmem:[#allocation2 + $0x18] sm:$0xf]
    %v58 = vld [vmem:[#allocation2 + $0x1c] sm:$0xf]
    %v59 = vld [vmem:[#allocation2 + $0x20] sm:$0xf]
    %v60 = vld [vmem:[#allocation2 + $0x24] sm:$0xf]
    %v61 = vld [vmem:[#allocation2 + $0x28] sm:$0xf]
    %v62 = vld [vmem:[#allocation2 + $0x2c] sm:$0xf]
    %v63 = vld [vmem:[#allocation2 + $0x30] sm:$0xf]
    %v64 = vld [vmem:[#allocation2 + $0x34] sm:$0xf]
    %v65 = vld [vmem:[#allocation2 + $0x38] sm:$0xf]
    %v66 = vld [vmem:[#allocation2 + $0x3c] sm:$0xf]
    %v67 = vld [vmem:[%s2] sm:$0x1]
    %v69 = vlaneseq
    %v70 = vshrl.u32 %v69, 7
    %v71 = vsub.s32 0, %v70
    %v72 = vrot.slane %v67, %v71
    %v90 = vunpack.c.l.b16 %v51
    %v91 = vunpack.c.l.b16 %v52
    %v92 = vunpack.c.l.b16 %v53
    %v93 = vunpack.c.l.b16 %v54
    %v94 = vunpack.c.l.b16 %v55
    %v95 = vunpack.c.l.b16 %v56
    %v96 = vunpack.c.l.b16 %v57
    %v97 = vunpack.c.l.b16 %v58
    %v98 = vunpack.c.l.b16 %v59
    %v99 = vunpack.c.l.b16 %v60
    %v100 = vunpack.c.l.b16 %v61
    %v101 = vunpack.c.l.b16 %v62
    %v102 = vunpack.c.l.b16 %v63
    %v103 = vunpack.c.l.b16 %v64
    %v104 = vunpack.c.l.b16 %v65
    %v105 = vunpack.c.l.b16 %v66
    %v106 = vpack.c.b16 %v91, %v90
    %v107 = vpack.c.b16 %v93, %v92
    %v108 = vpack.c.b16 %v95, %v94
    %v109 = vpack.c.b16 %v97, %v96
    %v110 = vpack.c.b16 %v99, %v98
    %v111 = vpack.c.b16 %v101, %v100
    %v112 = vpack.c.b16 %v103, %v102
    %v113 = vpack.c.b16 %v105, %v104
    %122 = vmatprep.subr.bf16.mxu0 0
    %123 = vmatpush1.bf16.msra.mxu0 %v106
    %124 = vmatprep.subr.bf16.mxu0 0
    %125 = vmatpush1.bf16.msra.mxu0 %v107
    %126 = vmatprep.subr.bf16.mxu0 0
    %127 = vmatpush1.bf16.msra.mxu0 %v108
    %128 = vmatprep.subr.bf16.mxu0 0
    %129 = vmatpush1.bf16.msra.mxu0 %v109
    %130 = vmatprep.subr.bf16.mxu0 0
    %131 = vmatpush1.bf16.msra.mxu0 %v110
    %132 = vmatprep.subr.bf16.mxu0 0
    %133 = vmatpush1.bf16.msra.mxu0 %v111
    %134 = vmatprep.subr.bf16.mxu0 0
    %135 = vmatpush1.bf16.msra.mxu0 %v112
    %136 = vmatprep.subr.bf16.mxu0 0
    %137 = vmatpush1.bf16.msra.mxu0 %v113
    %138 = vmatprep.subr.bf16.mxu0 0
    %139 = vmatpush1.bf16.msra.mxu0 0
    %140 = vmatprep.subr.bf16.mxu0 0
    %141 = vmatpush1.bf16.msra.mxu0 0
    %142 = vmatprep.subr.bf16.mxu0 0
    %143 = vmatpush1.bf16.msra.mxu0 0
    %144 = vmatprep.subr.bf16.mxu0 0
    %145 = vmatpush1.bf16.msra.mxu0 0
    %146 = vmatprep.subr.bf16.mxu0 0
    %147 = vmatpush1.bf16.msra.mxu0 0
    %148 = vmatprep.subr.bf16.mxu0 0
    %149 = vmatpush1.bf16.msra.mxu0 0
    %150 = vmatprep.subr.bf16.mxu0 0
    %151 = vmatpush1.bf16.msra.mxu0 0
    %152 = vmatprep.subr.bf16.mxu0 0
    %153 = vmatpush1.bf16.msra.mxu0 0
    %154 = vmatprep.mubr.bf16.mxu0 0
    %155 = vmatmul.mubr.bf16.gmra.mrb[0].mxu0 %v50
    %v156 = vpop.f32.mrb[0].mxu0
    %v157 = vadd.f32 %v72, %v156
    %v158 = vpop.f32.mrb[0].mxu0
    %v159 = vpop.f32.mrb[0].mxu0
    %v160 = vpop.f32.mrb[0].mxu0
    %161 = vdwg.mxu0
    %v162 = vmul.f32 %v157, 0.01
    %v163 = vmax.f32 %v157, %v162
    %v164 = vpack.c.bf16 %v163, %v163
    %v165 = vld [vmem:[#allocation5] sm:$0xf]
    %v166 = vld [vmem:[#allocation5 + $0x4] sm:$0xf]
    %v167 = vld [vmem:[#allocation5 + $0x8] sm:$0xf]
    %v168 = vld [vmem:[#allocation5 + $0xc] sm:$0xf]
    %v169 = vld [vmem:[#allocation5 + $0x10] sm:$0xf]
    %v170 = vld [vmem:[#allocation5 + $0x14] sm:$0xf]
    %v171 = vld [vmem:[#allocation5 + $0x18] sm:$0xf]
    %v172 = vld [vmem:[#allocation5 + $0x1c] sm:$0xf]
    %v173 = vld [vmem:[#allocation5 + $0x20] sm:$0xf]
    %v174 = vld [vmem:[#allocation5 + $0x24] sm:$0xf]
    %v175 = vld [vmem:[#allocation5 + $0x28] sm:$0xf]
    %v176 = vld [vmem:[#allocation5 + $0x2c] sm:$0xf]
    %v177 = vld [vmem:[#allocation5 + $0x30] sm:$0xf]
    %v178 = vld [vmem:[#allocation5 + $0x34] sm:$0xf]
    %v179 = vld [vmem:[#allocation5 + $0x38] sm:$0xf]
    %v180 = vld [vmem:[#allocation5 + $0x3c] sm:$0xf]
    %v181 = vld [vmem:[%s4] sm:$0x1]
    %v183 = vlaneseq
    %v184 = vshrl.u32 %v183, 7
    %v185 = vsub.s32 0, %v184
    %v186 = vrot.slane %v181, %v185
    %v204 = vunpack.c.l.b16 %v165
    %v205 = vunpack.c.l.b16 %v166
    %v206 = vunpack.c.l.b16 %v167
    %v207 = vunpack.c.l.b16 %v168
    %v208 = vunpack.c.l.b16 %v169
    %v209 = vunpack.c.l.b16 %v170
    %v210 = vunpack.c.l.b16 %v171
    %v211 = vunpack.c.l.b16 %v172
    %v212 = vunpack.c.l.b16 %v173
    %v213 = vunpack.c.l.b16 %v174
    %v214 = vunpack.c.l.b16 %v175
    %v215 = vunpack.c.l.b16 %v176
    %v216 = vunpack.c.l.b16 %v177
    %v217 = vunpack.c.l.b16 %v178
    %v218 = vunpack.c.l.b16 %v179
    %v219 = vunpack.c.l.b16 %v180
    %v220 = vpack.c.b16 %v205, %v204
    %v221 = vpack.c.b16 %v207, %v206
    %v222 = vpack.c.b16 %v209, %v208
    %v223 = vpack.c.b16 %v211, %v210
    %v224 = vpack.c.b16 %v213, %v212
    %v225 = vpack.c.b16 %v215, %v214
    %v226 = vpack.c.b16 %v217, %v216
    %v227 = vpack.c.b16 %v219, %v218
    %236 = vmatprep.subr.bf16.mxu0 0
    %237 = vmatpush1.bf16.msra.mxu0 %v220
    %238 = vmatprep.subr.bf16.mxu0 0
    %239 = vmatpush1.bf16.msra.mxu0 %v221
    %240 = vmatprep.subr.bf16.mxu0 0
    %241 = vmatpush1.bf16.msra.mxu0 %v222
    %242 = vmatprep.subr.bf16.mxu0 0
    %243 = vmatpush1.bf16.msra.mxu0 %v223
    %244 = vmatprep.subr.bf16.mxu0 0
    %245 = vmatpush1.bf16.msra.mxu0 %v224
    %246 = vmatprep.subr.bf16.mxu0 0
    %247 = vmatpush1.bf16.msra.mxu0 %v225
    %248 = vmatprep.subr.bf16.mxu0 0
    %249 = vmatpush1.bf16.msra.mxu0 %v226
    %250 = vmatprep.subr.bf16.mxu0 0
    %251 = vmatpush1.bf16.msra.mxu0 %v227
    %252 = vmatprep.subr.bf16.mxu0 0
    %253 = vmatpush1.bf16.msra.mxu0 0
    %254 = vmatprep.subr.bf16.mxu0 0
    %255 = vmatpush1.bf16.msra.mxu0 0
    %256 = vmatprep.subr.bf16.mxu0 0
    %257 = vmatpush1.bf16.msra.mxu0 0
    %258 = vmatprep.subr.bf16.mxu0 0
    %259 = vmatpush1.bf16.msra.mxu0 0
    %260 = vmatprep.subr.bf16.mxu0 0
    %261 = vmatpush1.bf16.msra.mxu0 0
    %262 = vmatprep.subr.bf16.mxu0 0
    %263 = vmatpush1.bf16.msra.mxu0 0
    %264 = vmatprep.subr.bf16.mxu0 0
    %265 = vmatpush1.bf16.msra.mxu0 0
    %266 = vmatprep.subr.bf16.mxu0 0
    %267 = vmatpush1.bf16.msra.mxu0 0
    %268 = vmatprep.mubr.bf16.mxu0 0
    %269 = vmatmul.mubr.bf16.gmra.mrb[0].mxu0 %v164
    %v270 = vpop.f32.mrb[0].mxu0
    %v271 = vadd.f32 %v186, %v270
    %v272 = vpop.f32.mrb[0].mxu0
    %v273 = vpop.f32.mrb[0].mxu0
    %v274 = vpop.f32.mrb[0].mxu0
    %275 = vdwg.mxu0
    %276 = vst [vmem:[#allocation7] sm:$0xff] %v271
    // Predicated region
    $region30: #{_ffn_run.1} parent=1 // pred_check
      _
    $region31: #{_ffn_run.1} parent=1 // pred_check_branch
      %278 = sbr.rel (0) target = $region33
    $region32: #{_ffn_run.1} parent=1 // pred_region
      %s280 = ssub.s32 128, 128
      %281 = vsyncadd [#allocation4], %s280
      %s283 = sshll.u32 [#allocation7], 4
      %s284 = int_to_ptr.vmem [resolvable:$true] %s283
      %286 = dma.vmem_to_hbm [thread:$0]  %s284, 128, %s5, [#allocation4]
    $region33: #{_ffn_run.1} parent=1 // pred_fallthru
      _
    // Predicated region
    $region34: #{_ffn_run.1} parent=1 // pred_check
      _
    $region35: #{_ffn_run.1} parent=1 // pred_check_branch
      %288 = sbr.rel (0) target = $region37
    $region36: #{_ffn_run.1} parent=1 // pred_region
      %289 = dma.done [#allocation4], 128
    $region37: #{_ffn_run.1} parent=1 // pred_fallthru
      _
    %290 = vsyncpa [#allocation3], 1
    %291 = vsyncpa [#allocation6], 1
    %292 = vsyncpa [#allocation4], 1

</llo_original>
